<compile_context>
chip_gen: v5e
topology: v5e:2x2
jax: 0.10.0
libtpu: 0.0.40
codegen_flags: <defaults>
</compile_context>

<pallas_src>
import functools

import jax
import jax.numpy as jnp
from jax import lax
from jax.experimental import pallas as pl
from jax.experimental.pallas import tpu as pltpu


def _round_up(v, m):
    return (v + m - 1) // m * m


def _cdiv(a, b):
    return -(-a // b)


def _linear_probe_kernel(x_ref, w_ref, b_ref, o_ref, acc_ref, *, hw, thw, mask_tail):
    # x_ref: [TB, C, THW]   w_ref: [C, K] (pre-scaled by 1/HW)   b_ref: [1, K]
    # o_ref: [1, TB, K]     acc_ref (scratch): [TB, C] f32
    s = pl.program_id(1)

    @pl.when(s == 0)
    def _():
        acc_ref[...] = jnp.zeros_like(acc_ref)

    x = x_ref[...]
    if mask_tail:
        # Ragged spatial tail: zero out-of-range lanes before the reduction.
        lane = lax.broadcasted_iota(jnp.int32, x.shape, x.ndim - 1)
        x = jnp.where(lane < (hw - s * thw), x, 0)

    # Per-chunk partial spatial sum, accumulated in f32 (no full-tile f32 cast of x).
    acc_ref[...] += jnp.sum(x, axis=-1, dtype=jnp.float32)

    @pl.when(s == pl.num_programs(1) - 1)
    def _():
        # Weight already carries the 1/(H*W) mean divisor (folded in the wrapper).
        out = jnp.dot(acc_ref[...], w_ref[...].astype(jnp.float32),
                      preferred_element_type=jnp.float32)          # [TB, K]
        out = out + b_ref[...].astype(jnp.float32)
        o_ref[0] = out.astype(o_ref.dtype)


def linear_probe(x_nchw, weight, bias, *, target_block_bytes=8 << 20):
    """AdaptiveAvgPool2d((1,1)) -> flatten(1) -> Linear.

    x_nchw: [B, C, H, W]; weight: [K, C] (nn.Linear layout); bias: [K].
    """
    B, C, H, W = x_nchw.shape
    K = weight.shape[0]
    HW = H * W
    itemsize = jnp.dtype(x_nchw.dtype).itemsize
    C8 = _round_up(C, 8)

    # ---- batch tile ---------------------------------------------------------
    # Shrink TB first if a minimum-width (128-lane) block already busts the
    # budget (large-C probes); then cap at 8 rows / the batch size.
    tb_cap = max(1, target_block_bytes // (C8 * 128 * itemsize))
    TB = max(1, min(B, 8, tb_cap))
    # Keep the "parallel" batch axis >= 2 so v7x megacore shards the stream.
    if B >= 2 and _cdiv(B, TB) < 2:
        TB = _cdiv(B, 2)
    # TODO(synk): for B == 1 with very large H*W, split the spatial axis into an
    # outer parallel chunk axis (per-chunk pooled partials + tiny combine step)
    # so both v7x TensorCores are used.
    grid_b = _cdiv(B, TB)

    # ---- spatial tile -------------------------------------------------------
    full_fits = TB * C8 * _round_up(HW, 128) * itemsize <= target_block_bytes
    if full_fits or HW <= 128:
        THW = HW            # full-extent last dim: exempt from 128-divisibility
        mask_tail = False
    else:
        THW = max(128, (target_block_bytes // (TB * C8 * itemsize)) // 128 * 128)
        mask_tail = (HW % THW) != 0
    grid_s = _cdiv(HW, THW)

    # ---- glue (no padding, no extra copies of x) ----------------------------
    x_flat = x_nchw.reshape(B, C, HW)                         # free reshape
    inv_hw = 1.0 / float(HW)
    # Fold the mean divisor into the weight; keep the weight's original dtype
    # (bf16 stays bf16 -> half the resident VMEM / one-time DMA).
    w_t = (weight.astype(jnp.float32).T * inv_hw).astype(weight.dtype)   # [C, K]
    b2 = bias.reshape(1, K)                                              # [1, K]

    # ---- scoped-VMEM request from the real footprint -------------------------
    def _pad2d(r, c, isz):
        return _round_up(r, 8) * _round_up(c, 128) * isz

    x_blk = TB * C8 * _round_up(THW, 128) * itemsize
    w_res = _pad2d(C, K, jnp.dtype(w_t.dtype).itemsize)
    b_res = _pad2d(1, K, jnp.dtype(b2.dtype).itemsize)
    acc_b = _pad2d(TB, C, 4)
    out_b = _pad2d(TB, K, itemsize)
    footprint = 2 * x_blk + 2 * w_res + 2 * b_res + acc_b + 2 * out_b
    vmem_limit = int(min(max(footprint + (8 << 20), 32 << 20), 56 << 20))

    kernel = functools.partial(_linear_probe_kernel,
                               hw=HW, thw=THW, mask_tail=mask_tail)

    out = pl.pallas_call(
        kernel,
        out_shape=jax.ShapeDtypeStruct((grid_b, TB, K), x_nchw.dtype),
        grid=(grid_b, grid_s),
        in_specs=[
            # x streams over (batch tile, spatial chunk); last batch block may be
            # partial (garbage rows are independent and sliced off below).
            pl.BlockSpec((TB, C, THW), lambda i, s: (i, 0, s)),
            # Weight / bias resident (constant index maps -> DMA'd once).
            pl.BlockSpec((C, K), lambda i, s: (0, 0)),
            pl.BlockSpec((1, K), lambda i, s: (0, 0)),
        ],
        # Same output block across the spatial axis -> written only at finalize.
        out_specs=pl.BlockSpec((1, TB, K), lambda i, s: (i, 0, 0)),
        scratch_shapes=[pltpu.VMEM((TB, C), jnp.float32)],
        compiler_params=pltpu.CompilerParams(
            dimension_semantics=("parallel", "arbitrary"),
            vmem_limit_bytes=vmem_limit),
    )(x_flat, w_t, b2)
    return out.reshape(grid_b * TB, K)[:B]


def linear_probe_ref(x_nchw, weight, bias):
    pooled = jnp.mean(x_nchw, axis=(2, 3))      # AdaptiveAvgPool2d((1,1)) + flatten
    return pooled @ weight.T + bias


if __name__ == "__main__":
    key = jax.random.PRNGKey(0)
    kx, kw, kb = jax.random.split(key, 3)

    # --- main shape (matches the module: in_features=C) ----------------------
    B, C, H, W = 2, 4, 16, 16
    num_classes = 8
    x = jax.random.normal(kx, (B, C, H, W), dtype=jnp.float32)
    weight = jax.random.normal(kw, (num_classes, C), dtype=jnp.float32) * 0.1
    bias = jax.random.normal(kb, (num_classes,), dtype=jnp.float32) * 0.1

    out = jax.block_until_ready(linear_probe(x, weight, bias))
    ref = linear_probe_ref(x, weight, bias)
    assert out.shape == (B, num_classes)
    assert jnp.allclose(out, ref, atol=1e-5, rtol=1e-5)

    # --- tiny block budget -> multi-step spatial accumulation (no tail mask) --
    out2 = jax.block_until_ready(
        linear_probe(x, weight, bias, target_block_bytes=1024))
    assert jnp.allclose(out2, ref, atol=1e-5, rtol=1e-5)

    # --- ragged spatial tail (13x13=169) -> in-kernel lane mask path ----------
    x3 = jax.random.normal(jax.random.fold_in(kx, 1), (2, 4, 13, 13), jnp.float32)
    out3 = jax.block_until_ready(
        linear_probe(x3, weight, bias, target_block_bytes=1024))
    ref3 = linear_probe_ref(x3, weight, bias)
    assert jnp.allclose(out3, ref3, atol=1e-5, rtol=1e-5)

    # --- partial last batch block (B=10, TB=8), full-extent spatial (7x7=49) --
    x4 = jax.random.normal(jax.random.fold_in(kx, 2), (10, 4, 7, 7), jnp.float32)
    out4 = jax.block_until_ready(linear_probe(x4, weight, bias))
    ref4 = linear_probe_ref(x4, weight, bias)
    assert out4.shape == (10, num_classes)
    assert jnp.allclose(out4, ref4, atol=1e-5, rtol=1e-5)

    print("KERNEL_OK")
</pallas_src>

<mosaic_0001>
module attributes {stable_mosaic.version = 11 : i64} {
  func.func @_linear_probe_kernel(%arg0: i32, %arg1: i32, %arg2: memref<1x4x256xf32, #tpu.memory_space<vmem>>, %arg3: memref<4x8xf32, #tpu.memory_space<vmem>>, %arg4: memref<1x8xf32, #tpu.memory_space<vmem>>, %arg5: memref<1x1x8xf32, #tpu.memory_space<vmem>>, %arg6: memref<1x4xf32, #tpu.memory_space<vmem>>) attributes {dimension_semantics = [#tpu.dimension_semantics<parallel>, #tpu.dimension_semantics<arbitrary>], iteration_bounds = array<i64: 2, 1>, scalar_prefetch = 0 : i64, scratch_operands = 1 : i64, tpu.core_type = #tpu.core_type<tc>, window_params = [{transform_indices = @transform_0, window_bounds = array<i64: 1, 4, 256>}, {pipeline_mode = #tpu.pipeline_mode<synchronous>, transform_indices = @transform_1, window_bounds = array<i64: 4, 8>}, {pipeline_mode = #tpu.pipeline_mode<synchronous>, transform_indices = @transform_2, window_bounds = array<i64: 1, 8>}, {transform_indices = @transform_3, window_bounds = array<i64: 1, 1, 8>}]} {
    %c0_i32 = arith.constant 0 : i32
    %0 = arith.cmpi eq, %arg1, %c0_i32 : i32
    %1 = arith.extui %0 : i1 to i32
    %c0_i32_0 = arith.constant 0 : i32
    %2 = arith.cmpi ne, %1, %c0_i32_0 : i32
    scf.if %2 {
      %cst_9 = arith.constant 0.000000e+00 : f32
      %11 = vector.broadcast %cst_9 : f32 to vector<1x4xf32>
      %c0_10 = arith.constant 0 : index
      %c0_11 = arith.constant 0 : index
      %12 = vector.load %arg6[%c0_10, %c0_11] : memref<1x4xf32, #tpu.memory_space<vmem>>, vector<1x4xf32>
      tpu.vector_store %arg6[%c0_10, %c0_11], %11 {strides = array<i32>} : memref<1x4xf32, #tpu.memory_space<vmem>>, vector<1x4xf32>,
    } else {
    }
    %c0 = arith.constant 0 : index
    %c0_1 = arith.constant 0 : index
    %c0_2 = arith.constant 0 : index
    %3 = vector.load %arg2[%c0, %c0_1, %c0_2] : memref<1x4x256xf32, #tpu.memory_space<vmem>>, vector<1x4x256xf32>
    %c0_3 = arith.constant 0 : index
    %c0_4 = arith.constant 0 : index
    %4 = vector.load %arg6[%c0_3, %c0_4] : memref<1x4xf32, #tpu.memory_space<vmem>>, vector<1x4xf32>
    %cst = arith.constant dense<0.000000e+00> : vector<1x4xf32>
    %5 = vector.multi_reduction <add>, %3, %cst [2] : vector<1x4x256xf32> to vector<1x4xf32>
    %6 = arith.addf %4, %5 : vector<1x4xf32>
    %c0_5 = arith.constant 0 : index
    %c0_6 = arith.constant 0 : index
    %7 = vector.load %arg6[%c0_5, %c0_6] : memref<1x4xf32, #tpu.memory_space<vmem>>, vector<1x4xf32>
    tpu.vector_store %arg6[%c0_5, %c0_6], %6 {strides = array<i32>} : memref<1x4xf32, #tpu.memory_space<vmem>>, vector<1x4xf32>,
    %c0_i32_7 = arith.constant 0 : i32
    %8 = arith.cmpi eq, %arg1, %c0_i32_7 : i32
    %9 = arith.extui %8 : i1 to i32
    %c0_i32_8 = arith.constant 0 : i32
    %10 = arith.cmpi ne, %9, %c0_i32_8 : i32
    scf.if %10 {
      %c0_9 = arith.constant 0 : index
      %c0_10 = arith.constant 0 : index
      %11 = vector.load %arg6[%c0_9, %c0_10] : memref<1x4xf32, #tpu.memory_space<vmem>>, vector<1x4xf32>
      %c0_11 = arith.constant 0 : index
      %c0_12 = arith.constant 0 : index
      %12 = vector.load %arg3[%c0_11, %c0_12] : memref<4x8xf32, #tpu.memory_space<vmem>>, vector<4x8xf32>
      %cst_13 = arith.constant dense<0.000000e+00> : vector<1x8xf32>
      %13 = tpu.matmul %11, %12, %cst_13 {dimension_numbers = #tpu.dot_dimension_numbers<[1], [0], [0], [1], [0, 0, 1, 1], [], []>} : vector<1x4xf32>, vector<4x8xf32>, vector<1x8xf32> -> vector<1x8xf32>
      %c0_14 = arith.constant 0 : index
      %c0_15 = arith.constant 0 : index
      %14 = vector.load %arg4[%c0_14, %c0_15] : memref<1x8xf32, #tpu.memory_space<vmem>>, vector<1x8xf32>
      %15 = arith.addf %13, %14 : vector<1x8xf32>
      %c0_16 = arith.constant 0 : index
      %c0_17 = arith.constant 0 : index
      %c0_18 = arith.constant 0 : index
      %16 = vector.load %arg5[%c0_16, %c0_17, %c0_18] : memref<1x1x8xf32, #tpu.memory_space<vmem>>, vector<1x1x8xf32>
      %17 = vector.shape_cast %16 : vector<1x1x8xf32> to vector<1x8xf32>
      %18 = vector.shape_cast %15 : vector<1x8xf32> to vector<1x1x8xf32>
      tpu.vector_store %arg5[%c0_16, %c0_17, %c0_18], %18 {strides = array<i32>} : memref<1x1x8xf32, #tpu.memory_space<vmem>>, vector<1x1x8xf32>,
    } else {
    }
    return
  }
  func.func @transform_0(%arg0: i32, %arg1: i32) -> (i32, i32, i32) {
    %c0_i32 = arith.constant 0 : i32
    %c0_i32_0 = arith.constant 0 : i32
    return %arg0, %c0_i32, %arg1 : i32, i32, i32
  }
  func.func @transform_1(%arg0: i32, %arg1: i32) -> (i32, i32) {
    %c0_i32 = arith.constant 0 : i32
    %c0_i32_0 = arith.constant 0 : i32
    %c0_i32_1 = arith.constant 0 : i32
    return %c0_i32, %c0_i32_0 : i32, i32
  }
  func.func @transform_2(%arg0: i32, %arg1: i32) -> (i32, i32) {
    %c0_i32 = arith.constant 0 : i32
    %c0_i32_0 = arith.constant 0 : i32
    %c0_i32_1 = arith.constant 0 : i32
    return %c0_i32, %c0_i32_0 : i32, i32
  }
  func.func @transform_3(%arg0: i32, %arg1: i32) -> (i32, i32, i32) {
    %c0_i32 = arith.constant 0 : i32
    %c0_i32_0 = arith.constant 0 : i32
    %c0_i32_1 = arith.constant 0 : i32
    return %arg0, %c0_i32, %c0_i32_0 : i32, i32, i32
  }
}

</mosaic_0001>

<llo_original>
// kernel: tpu_custom_call.1
$region0: #{tpu_custom_call.1}
  #allocation0 [shape = 'u32[]', space=smem, size = 0x4, offset = 0x4, fixed_abs, tag = 'smem constant byte address 0x4 - core index']
  #allocation1 [shape = 'u32[72,128]{1,0:T(1,128)}', space=vmem, size = 0x9000, scoped, tag = 'internal scratch']
  #allocation2 [shape = 'f32[1,4]{1,0:T(1,128)}', space=vmem, size = 0x200, scoped, tag = 'scratch operand']
  %s0 = inlined_call_operand.hbm [shape: f32[2,4,256], index: 0, kind: input, shape index: {}]
  %s1 = inlined_call_operand.hbm [shape: f32[4,8], index: 1, kind: input, shape index: {}]
  %s2 = inlined_call_operand.vmem [shape: f32[1,8], index: 2, kind: input, shape index: {}]
  %s3 = inlined_call_operand.hbm [shape: f32[2,1,8], index: 3, kind: output, shape index: {}]
  %s4 = sld [smem:[#allocation0]]
  $region61: #{tpu_custom_call.1} parent=0
    _
  %s6 = ssub.s32 1, %s4
  %s7 = scalar_select 0, %s6, %s4
  $region1: #{tpu_custom_call.1} parent=0
    #allocation3 [shape = 'u8[8192]{0}', space=vmem, size = 0x2000, scoped, tag = 'input window, operand 0']
    #allocation4 [shape = 's32[2]{0}', space=sflag, size = 0x8, scoped, tag = 'scoped memory for tpu_custom_call.1']
    #allocation5 [shape = 's32[2]{0}', space=sflag, size = 0x8, scoped, tag = 'scoped memory for tpu_custom_call.1']
    #allocation6 [shape = 'u8[2048]{0}', space=vmem, size = 0x800, scoped, tag = 'input window, operand 1, single buffered']
    #allocation7 [shape = 's32[1]{0}', space=sflag, size = 0x4, scoped, tag = 'scoped memory for tpu_custom_call.1']
    #allocation8 [shape = 'u8[1024]{0}', space=vmem, size = 0x400, scoped, tag = 'output window, operand 0']
    %8 = vsyncpa [#allocation4], 0
    %s9 = scalar_lea.sflag [#allocation4], 1
    %10 = vsyncpa %s9, 0
    %11 = vsyncpa [#allocation7], 0
    %12 = vsyncpa [#allocation5], 0
    %s13 = scalar_lea.sflag [#allocation5], 1
    %14 = vsyncpa %s13, 0
    loop: start=0, step=1, limit=4
    $region2: #{tpu_custom_call.1} parent=1 // loop_pre_header
      _
    $region3: #{tpu_custom_call.1} parent=1 // loop_header
      %s16 = sphi 0, %s20
      %p17 = scmp.ge.s32.totalorder %s16, 4
      %s23 = sphi 0, %s35
      %s24 = sphi 0, %s31
      %s25 = sphi 0, %s23
      %s26 = sphi 0, %s24
      %s27 = sphi 0, %s25
      %s28 = sphi 0, %s26
      %s40 = sphi 0, %s42
      %s43 = sphi 0, %s40
      %s44 = sphi 0, %s43
      %s60 = sphi 0, %s44
      %s64 = sphi 0, %s64
      %s66 = sphi 0, %s64
      %s67 = sphi 0, %s66
      %s81 = sphi 0, %s67
      %s85 = sphi 0, %s85
      %s87 = sphi 0, %s85
      %s88 = sphi 0, %s87
      %s102 = sphi 0, %s88
      %s108 = sphi 0, %s110
      %s111 = sphi 0, %s108
      %s112 = sphi 0, %s111
      %s128 = sphi 0, %s112
    $region4: #{tpu_custom_call.1} parent=1 // loop_header_branch
      %19 = sbr.rel (%p17) target = $region8
    $region5: #{tpu_custom_call.1} parent=1 // loop_body
      %s21 = ssub.s32 %s16, 1
      %s22 = ssub.s32 %s16, 2
      %s29 = sadd.s32 1, %s24
      %p30 = scmp.ge.s32.totalorder %s29, 1
      %s31 = scalar_select %p30, 0, %s29
      %s32 = sadd.s32 1, %s23
      %s33 = scalar_select %p30, %s32, %s23
      %p34 = scmp.ge.s32.totalorder %s33, 2
      %s35 = scalar_select %p34, 0, %s33
      %s36 = ssub.s32 %s23, %s35
      %s37 = ssub.s32 %s24, %s31
      %s38 = sor.u32 %s36, %s37
      %p39 = scmp.eq.s32.totalorder %s38, 0
      %s41 = sadd.s32 %s40, 1
      %s42 = scalar_select %p39, %s40, %s41
      %p45 = pneg %p39
      %p46 = scmp.eq.s32.totalorder %s16, 1
      %p47 = por %p45, %p46
      %p48 = scmp.ne.s32.totalorder %s40, %s43
      %p49 = scmp.eq.s32.totalorder %s16, 0
      %p50 = por %p48, %p49
      %p51 = scmp.ne.s32.totalorder %s40, %s43
      %p52 = scmp.eq.s32.totalorder %s21, 1
      %p53 = por %p51, %p52
      %p54 = scmp.ne.s32.totalorder %s43, %s44
      %p55 = scmp.eq.s32.totalorder %s21, 0
      %p56 = por %p54, %p55
      %p57 = scmp.ne.s32.totalorder %s43, %s44
      %p58 = scmp.eq.s32.totalorder %s22, 1
      %p59 = por %p57, %p58
      %p61 = scmp.ne.s32.totalorder %s44, %s60
      %p62 = scmp.eq.s32.totalorder %s22, 0
      %p63 = por %p61, %p62
      %s65 = sadd.s32 %s64, 1
      %p68 = scmp.eq.s32.totalorder %s16, 1
      %p69 = scmp.ne.s32.totalorder %s64, %s66
      %p70 = scmp.eq.s32.totalorder %s16, 0
      %p71 = por %p69, %p70
      %p72 = scmp.ne.s32.totalorder %s64, %s66
      %p73 = scmp.eq.s32.totalorder %s21, 1
      %p74 = por %p72, %p73
      %p75 = scmp.ne.s32.totalorder %s66, %s67
      %p76 = scmp.eq.s32.totalorder %s21, 0
      %p77 = por %p75, %p76
      %p78 = scmp.ne.s32.totalorder %s66, %s67
      %p79 = scmp.eq.s32.totalorder %s22, 1
      %p80 = por %p78, %p79
      %p82 = scmp.ne.s32.totalorder %s67, %s81
      %p83 = scmp.eq.s32.totalorder %s22, 0
      %p84 = por %p82, %p83
      %s86 = sadd.s32 %s85, 1
      %p89 = scmp.eq.s32.totalorder %s16, 1
      %p90 = scmp.ne.s32.totalorder %s85, %s87
      %p91 = scmp.eq.s32.totalorder %s16, 0
      %p92 = por %p90, %p91
      %p93 = scmp.ne.s32.totalorder %s85, %s87
      %p94 = scmp.eq.s32.totalorder %s21, 1
      %p95 = por %p93, %p94
      %p96 = scmp.ne.s32.totalorder %s87, %s88
      %p97 = scmp.eq.s32.totalorder %s21, 0
      %p98 = por %p96, %p97
      %p99 = scmp.ne.s32.totalorder %s87, %s88
      %p100 = scmp.eq.s32.totalorder %s22, 1
      %p101 = por %p99, %p100
      %p103 = scmp.ne.s32.totalorder %s88, %s102
      %p104 = scmp.eq.s32.totalorder %s22, 0
      %p105 = por %p103, %p104
      %s106 = ssub.s32 %s23, %s35
      %p107 = scmp.eq.s32.totalorder %s106, 0
      %s109 = sadd.s32 %s108, 1
      %s110 = scalar_select %p107, %s108, %s109
      %p113 = pneg %p107
      %p114 = scmp.eq.s32.totalorder %s16, 1
      %p115 = por %p113, %p114
      %p116 = scmp.ne.s32.totalorder %s108, %s111
      %p117 = scmp.eq.s32.totalorder %s16, 0
      %p118 = por %p116, %p117
      %p119 = scmp.ne.s32.totalorder %s108, %s111
      %p120 = scmp.eq.s32.totalorder %s21, 1
      %p121 = por %p119, %p120
      %p122 = scmp.ne.s32.totalorder %s111, %s112
      %p123 = scmp.eq.s32.totalorder %s21, 0
      %p124 = por %p122, %p123
      %p125 = scmp.ne.s32.totalorder %s111, %s112
      %p126 = scmp.eq.s32.totalorder %s22, 1
      %p127 = por %p125, %p126
      %p129 = scmp.ne.s32.totalorder %s112, %s128
      %p130 = scmp.eq.s32.totalorder %s22, 0
      %p131 = por %p129, %p130
      %p132 = scmp.le.s32.totalorder 1, %s16
      %p133 = scmp.lt.s32.totalorder %s16, 3
      %p134 = pnand %p132, %p133
      %p135 = pneg %p134
      // Predicated region
      $region9: #{tpu_custom_call.1} parent=5 // pred_check
        _
      $region10: #{tpu_custom_call.1} parent=5 // pred_check_branch
        %137 = sbr.rel (%p134) target = $region12
      $region11: #{tpu_custom_call.1} parent=5 // pred_region
        %s138 = ssub.s32 %s16, 1
        // Predicated region
        $region13: #{tpu_custom_call.1} parent=11 // pred_check
          %p139 = pneg %p77
        $region14: #{tpu_custom_call.1} parent=11 // pred_check_branch
          %141 = sbr.rel (%p139) target = $region16
        $region15: #{tpu_custom_call.1} parent=11 // pred_region
          %143 = vsyncadd [#allocation7], 0
          %s145 = sshll.u32 %s1, 4
          %s146 = int_to_ptr.hbm [resolvable:$true] %s145
          %s147 = sshll.u32 [#allocation6], 4
          %s148 = int_to_ptr.vmem [resolvable:$true] %s147
          %150 = dma.hbm_to_vmem [thread:$0]  %s146, 64, %s148, [#allocation7]
        $region16: #{tpu_custom_call.1} parent=11 // pred_fallthru
          _
        // Predicated region
        $region17: #{tpu_custom_call.1} parent=11 // pred_check
          %p151 = pneg %p98
        $region18: #{tpu_custom_call.1} parent=11 // pred_check_branch
          %153 = sbr.rel (%p151) target = $region20
        $region19: #{tpu_custom_call.1} parent=11 // pred_region
          _
        $region20: #{tpu_custom_call.1} parent=11 // pred_fallthru
          _
      $region12: #{tpu_custom_call.1} parent=5 // pred_fallthru
        _
      %p154 = scmp.lt.s32.totalorder %s16, 2
      // Predicated region
      $region21: #{tpu_custom_call.1} parent=5 // pred_check
        %p155 = pneg %p154
      $region22: #{tpu_custom_call.1} parent=5 // pred_check_branch
        %157 = sbr.rel (%p155) target = $region24
      $region23: #{tpu_custom_call.1} parent=5 // pred_region
        // Predicated region
        $region25: #{tpu_custom_call.1} parent=23 // pred_check
          %p158 = pneg %p50
        $region26: #{tpu_custom_call.1} parent=23 // pred_check_branch
          %160 = sbr.rel (%p158) target = $region28
        $region27: #{tpu_custom_call.1} parent=23 // pred_region
          %s161 = sand.u32 %s40, 1
          %s162 = scalar_lea.sflag [#allocation4], %s161
          %s163 = sand.u32 %s40, 1
          %s164 = smul.addr %s163, 8
          %s165 = scalar_lea.vmem [#allocation3], %s164
          %s166 = smul.u32 2, %s24
          %168 = vsyncadd %s162, 0
          %s169 = smul.addr %s23, 2
          %s170 = sadd.s32 %s166, %s169
          %s171 = smul.addr %s170, 4
          %s172 = scalar_lea.hbm %s0, %s171
          %s174 = sshll.u32 %s172, 4
          %s175 = int_to_ptr.hbm [resolvable:$true] %s174
          %s176 = sshll.u32 %s165, 4
          %s177 = int_to_ptr.vmem [resolvable:$true] %s176
          %179 = dma.hbm_to_vmem [thread:$0]  %s175, 128, %s177, %s162
        $region28: #{tpu_custom_call.1} parent=23 // pred_fallthru
          _
      $region24: #{tpu_custom_call.1} parent=5 // pred_fallthru
        _
      %p180 = scmp.le.s32.totalorder 1, %s16
      %p181 = scmp.lt.s32.totalorder %s16, 3
      %p182 = pnand %p180, %p181
      %p183 = pneg %p182
      // Predicated region
      $region29: #{tpu_custom_call.1} parent=5 // pred_check
        _
      $region30: #{tpu_custom_call.1} parent=5 // pred_check_branch
        %185 = sbr.rel (%p182) target = $region32
      $region31: #{tpu_custom_call.1} parent=5 // pred_region
        %s186 = ssub.s32 %s16, 1
        %s187 = sand.u32 %s43, 1
        %s188 = scalar_lea.sflag [#allocation4], %s187
        %s189 = sand.u32 %s43, 1
        %s190 = smul.addr %s189, 8
        %s191 = scalar_lea.vmem [#allocation3], %s190
        // Predicated region
        $region33: #{tpu_custom_call.1} parent=31 // pred_check
          %p192 = pneg %p56
        $region34: #{tpu_custom_call.1} parent=31 // pred_check_branch
          %194 = sbr.rel (%p192) target = $region36
        $region35: #{tpu_custom_call.1} parent=31 // pred_region
          %196 = dma.done %s188, 128
        $region36: #{tpu_custom_call.1} parent=31 // pred_fallthru
          _
        // Predicated region
        $region37: #{tpu_custom_call.1} parent=31 // pred_check
          %p197 = pneg %p77
        $region38: #{tpu_custom_call.1} parent=31 // pred_check_branch
          %199 = sbr.rel (%p197) target = $region40
        $region39: #{tpu_custom_call.1} parent=31 // pred_region
          %201 = dma.done [#allocation7], 64
        $region40: #{tpu_custom_call.1} parent=31 // pred_fallthru
          _
        %s202 = sand.u32 %s43, 1
        %s203 = scalar_lea.sflag [#allocation4], %s202
        %s204 = sand.u32 %s43, 1
        %s205 = smul.addr %s204, 8
        %s206 = scalar_lea.vmem [#allocation3], %s205
        %p207 = pneg %p56
        %p208 = pneg %p53
        %p209 = pneg %p77
        %p210 = pneg %p74
        %p211 = pneg %p98
        %p212 = pneg %p95
        %p213 = pneg %p124
        %p214 = pneg %p121
        %s215 = sand.u32 %s111, 1
        %s216 = scalar_lea.sflag [#allocation5], %s215
        %s217 = sand.u32 %s111, 1
        %s218 = scalar_lea.vmem [#allocation8], %s217
        %s219 = smul.u32 2, %s26
        %p220 = scmp.eq.s32.totalorder %s26, 0
        // Predicated region
        $region41: #{tpu_custom_call.1} parent=31 // pred_check
          %p221 = pneg %p220
        $region42: #{tpu_custom_call.1} parent=31 // pred_check_branch
          %223 = sbr.rel (%p221) target = $region44
        $region43: #{tpu_custom_call.1} parent=31 // pred_region
          %vm224 = vcmask 24576
          %225 = vst.msk [vmem:[#allocation2] sm:$0x1] %vm224, 0.0
        $region44: #{tpu_custom_call.1} parent=31 // pred_fallthru
          _
        %v226 = vld [vmem:[%s191] sm:$0xff]
        %v227 = vld [vmem:[#allocation2] sm:$0x1]
        %229 = vst [vmem:[#allocation1] ss:$2 sm:$0xff] %v226
        %v230 = vld.sshfl [vmem:[#allocation1] sm:$0xff pattern:$0x75316420]
        %v231 = vld.sshfl [vmem:[#allocation1 + $0x8] sm:$0xff pattern:$0x75316420]
        %vm234 = vcmask 1043456
        %v235 = vsel %vm234, %v230, 0.0
        %v236 = vsel %vm234, %v231, 0.0
        %v237 = vadd.f32 %v235, %v236
        %238 = vadd.xlane.f32.xlu0 %v237
        %v239 = vpop.xlane.xlu0 %238
        %v241 = vperm.slane %v239, 0
        %v242 = vperm.slane %v239, 1
        %v243 = vperm.slane %v239, 2
        %v244 = vperm.slane %v239, 3
        %245 = vst [vmem:[#allocation1] ss:$9 sm:$0xff] %v241
        %s246 = scalar_lea.vmem [#allocation1], 1
        %247 = vst [vmem:[%s246] ss:$9 sm:$0xff] %v242
        %s248 = scalar_lea.vmem [#allocation1], 2
        %249 = vst [vmem:[%s248] ss:$9 sm:$0xff] %v243
        %s250 = scalar_lea.vmem [#allocation1], 3
        %251 = vst [vmem:[%s250] ss:$9 sm:$0xff] %v244
        %v252 = vld [vmem:[#allocation1] sm:$0xff]
        %253 = vset.pattern.permute.xlu0 0
        %254 = vperm.xlu0 %253, %v252
        %v255 = vpop.permute.xlu0 %254
        %v256 = vlaneseq
        %v257 = vand.u32 %v256, 127
        %v258 = vperm.slane %v255, %v257
        %v260 = vadd.f32 %v227, %v258
        %vm261 = vcmask 24576
        %262 = vst.msk [vmem:[#allocation2] sm:$0x1] %vm261, %v260
        // Predicated region
        $region45: #{tpu_custom_call.1} parent=31 // pred_check
          %p263 = pneg %p220
        $region46: #{tpu_custom_call.1} parent=31 // pred_check_branch
          %265 = sbr.rel (%p263) target = $region48
        $region47: #{tpu_custom_call.1} parent=31 // pred_region
          %v266 = vld [vmem:[#allocation2] sm:$0x1]
          %v267 = vld [vmem:[#allocation6] sm:$0xf]
          %v268 = vld [vmem:[%s2] sm:$0x1]
          %vm269 = vcmask 31744
          %v271 = vsel %vm269, %v266, 0
          %v274 = vsel %vm234, %v267, 0
          %276 = vmatpush.msra.mxu0 0.0
          %277 = vmatpush.msra.mxu0 0.0
          %278 = vmatpush.msra.mxu0 0.0
          %279 = vmatpush.msra.mxu0 0.0
          %280 = vmatpush.msra.mxu0 0.0
          %281 = vmatpush.msra.mxu0 0.0
          %282 = vmatpush.msra.mxu0 0.0
          %283 = vmatpush.msra.mxu0 0.0
          %284 = vmatpush.msra.mxu0 0.0
          %285 = vmatpush.msra.mxu0 0.0
          %286 = vmatpush.msra.mxu0 0.0
          %287 = vmatpush.msra.mxu0 0.0
          %288 = vmatpush.msra.mxu0 0.0
          %289 = vmatpush.msra.mxu0 0.0
          %290 = vmatpush.msra.mxu0 0.0
          %291 = vmatpush.msra.mxu0 %v274
          %292 = vmatmul.f32.gmra.mxu0 %v271
          %v293 = vpop.f32.mrf.mxu0
          %v294 = vadd.f32 %v268, %v293
          %295 = vdwg.mxu0
          %vm296 = vcmask 57344
          %297 = vst.msk [vmem:[%s218] sm:$0x1] %vm296, %v294
        $region48: #{tpu_custom_call.1} parent=31 // pred_fallthru
          _
        %s298 = sand.u32 %s111, 1
        %s299 = scalar_lea.sflag [#allocation5], %s298
        %s300 = sand.u32 %s111, 1
        %s301 = scalar_lea.vmem [#allocation8], %s300
        // Predicated region
        $region49: #{tpu_custom_call.1} parent=31 // pred_check
          %p302 = pneg %p121
        $region50: #{tpu_custom_call.1} parent=31 // pred_check_branch
          %304 = sbr.rel (%p302) target = $region52
        $region51: #{tpu_custom_call.1} parent=31 // pred_region
          %306 = vsyncadd %s299, 0
          %s307 = scalar_lea.hbm %s3, %s25
          %s309 = sshll.u32 %s301, 4
          %s310 = int_to_ptr.vmem [resolvable:$true] %s309
          %s311 = sshll.u32 %s307, 4
          %s312 = int_to_ptr.hbm [resolvable:$true] %s311
          %314 = dma.vmem_to_hbm [thread:$0]  %s310, 16, %s312, %s299
        $region52: #{tpu_custom_call.1} parent=31 // pred_fallthru
          _
      $region32: #{tpu_custom_call.1} parent=5 // pred_fallthru
        _
      %p315 = scmp.le.s32.totalorder 2, %s16
      // Predicated region
      $region53: #{tpu_custom_call.1} parent=5 // pred_check
        %p316 = pneg %p315
      $region54: #{tpu_custom_call.1} parent=5 // pred_check_branch
        %318 = sbr.rel (%p316) target = $region56
      $region55: #{tpu_custom_call.1} parent=5 // pred_region
        %s319 = ssub.s32 %s16, 2
        // Predicated region
        $region57: #{tpu_custom_call.1} parent=55 // pred_check
          %p320 = pneg %p127
        $region58: #{tpu_custom_call.1} parent=55 // pred_check_branch
          %322 = sbr.rel (%p320) target = $region60
        $region59: #{tpu_custom_call.1} parent=55 // pred_region
          %s323 = sand.u32 %s112, 1
          %s324 = scalar_lea.sflag [#allocation5], %s323
          %s325 = sand.u32 %s112, 1
          %s326 = scalar_lea.vmem [#allocation8], %s325
          %328 = dma.done %s324, 16
        $region60: #{tpu_custom_call.1} parent=55 // pred_fallthru
          _
      $region56: #{tpu_custom_call.1} parent=5 // pred_fallthru
        _
    $region6: #{tpu_custom_call.1} parent=1 // loop_footer
      %s20 = sadd.s32 1, %s16
    $region7: #{tpu_custom_call.1} parent=1 // loop_footer_branch
      %15 = sbr.rel target = $region3
    $region8: #{tpu_custom_call.1} parent=1 // loop_exit
      _
    %329 = vsyncpa [#allocation4], 1
    %s330 = scalar_lea.sflag [#allocation4], 1
    %331 = vsyncpa %s330, 1
    %332 = vsyncpa [#allocation7], 1
    %333 = vsyncpa [#allocation5], 1
    %s334 = scalar_lea.sflag [#allocation5], 1
    %335 = vsyncpa %s334, 1

</llo_original>
